<compile_context>
chip_gen: v5e
topology: v5e:2x2
jax: 0.10.0
libtpu: 0.0.40
codegen_flags: <defaults>
</compile_context>

<pallas_src>
import jax
import jax.numpy as jnp
from jax.experimental import pallas as pl
from jax.experimental.pallas import tpu as pltpu


NEG_BIG = -1e30  # finite "-inf" for padded expert lanes (keeps softmax exact, no NaNs)


def _gating_kernel(x_ref,
                   w1_ref, b1_ref,
                   w2_ref, b2_ref,
                   w3_ref, b3_ref,
                   w4_ref, b4_ref,
                   out_ref):
    # One batch tile per grid step. Matmuls run bf16 on the MXU with f32
    # accumulation; activation / softmax math stays f32.
    x = x_ref[...]                                                  # (TB, in_pad) bf16

    # layer1 + ReLU
    h = jnp.dot(x, w1_ref[...], preferred_element_type=jnp.float32) + b1_ref[...]
    h = jnp.maximum(h, 0.0)

    # layer2 + LeakyReLU(0.01)
    h = jnp.dot(h.astype(jnp.bfloat16), w2_ref[...],
                preferred_element_type=jnp.float32) + b2_ref[...]
    h = jnp.maximum(h, 0.01 * h)

    # layer3 + LeakyReLU(0.01)
    h = jnp.dot(h.astype(jnp.bfloat16), w3_ref[...],
                preferred_element_type=jnp.float32) + b3_ref[...]
    h = jnp.maximum(h, 0.01 * h)

    # layer4 + softmax over the (lane-dense, padded) experts axis.
    # Padded expert lanes carry a -1e30 bias -> exp underflows to 0, so the
    # denominator only sees the real experts.
    logits = jnp.dot(h.astype(jnp.bfloat16), w4_ref[...],
                     preferred_element_type=jnp.float32) + b4_ref[...]
    m = jnp.max(logits, axis=-1, keepdims=True)
    e = jnp.exp(logits - m)
    denom = jnp.sum(e, axis=-1, keepdims=True)
    out_ref[...] = e * pl.reciprocal(denom, approx=True)


def _round_up(n, m):
    return pl.cdiv(n, m) * m


def gating_forward(x, params, *, tb=512):
    """x: (B, input_dim). params: w_i (in, out) and b_i (1, out). Returns (B, num_experts) f32."""
    B, input_dim = x.shape
    num_experts = params["w4"].shape[1]

    # --- lane-dense contraction dim for layer1: pad input features to mult. of 128 ---
    in_pad = _round_up(max(input_dim, 128), 128)
    w1 = jnp.zeros((in_pad, params["w1"].shape[1]), jnp.float32)
    w1 = w1.at[:input_dim, :].set(params["w1"])

    # --- lane-dense final layer: pad experts up to a multiple of 128 ----------
    n_pad = _round_up(max(num_experts, 128), 128)
    w4 = jnp.zeros((params["w4"].shape[0], n_pad), jnp.float32)
    w4 = w4.at[:, :num_experts].set(params["w4"])
    b4 = jnp.full((1, n_pad), NEG_BIG, jnp.float32)
    b4 = b4.at[:, :num_experts].set(params["b4"])

    # --- batch tiling (cap tile for v7x's smaller VMEM; pad B to a tile multiple) ---
    TB = min(tb, _round_up(B, 16))          # 16: safe sublane multiple for bf16 tiles
    B_pad = _round_up(B, TB)
    x_p = x.astype(jnp.bfloat16)
    if B_pad != B or in_pad != input_dim:
        x_p = jnp.pad(x_p, ((0, B_pad - B), (0, in_pad - input_dim)))

    # bf16 weights for the MXU; biases stay f32 (added after f32 accumulation).
    w1 = w1.astype(jnp.bfloat16)
    w2 = params["w2"].astype(jnp.bfloat16)
    w3 = params["w3"].astype(jnp.bfloat16)
    w4 = w4.astype(jnp.bfloat16)
    b1, b2, b3 = params["b1"], params["b2"], params["b3"]

    def resident(shape):
        # Full-array block with a constant index_map: DMA'd once, stays VMEM-resident.
        return pl.BlockSpec(shape, lambda i: (0, 0))

    out = pl.pallas_call(
        _gating_kernel,
        out_shape=jax.ShapeDtypeStruct((B_pad, n_pad), jnp.float32),
        grid=(B_pad // TB,),
        in_specs=[
            pl.BlockSpec((TB, in_pad), lambda i: (i, 0)),
            resident(w1.shape), resident(b1.shape),
            resident(w2.shape), resident(b2.shape),
            resident(w3.shape), resident(b3.shape),
            resident(w4.shape), resident(b4.shape),
        ],
        out_specs=pl.BlockSpec((TB, n_pad), lambda i: (i, 0)),
        compiler_params=pltpu.CompilerParams(
            dimension_semantics=("parallel",)),
    )(x_p, w1, b1, w2, b2, w3, b3, w4, b4)

    return out[:B, :num_experts]


def init_params(key, input_dim, num_experts):
    """Deterministic init mirroring nn.Linear shapes.
    PyTorch Linear stores weight as (out, in); we store the transpose (in, out)
    so the kernel computes y = x @ W + b directly."""
    dims = [(input_dim, 128), (128, 256), (256, 128), (128, num_experts)]
    params = {}
    for i, (fan_in, fan_out) in enumerate(dims, start=1):
        key, kw, kb = jax.random.split(key, 3)
        bound = 1.0 / jnp.sqrt(fan_in)
        params[f"w{i}"] = jax.random.uniform(
            kw, (fan_in, fan_out), jnp.float32, -bound, bound)
        params[f"b{i}"] = jax.random.uniform(
            kb, (1, fan_out), jnp.float32, -bound, bound)
    return params


def gating_reference(x, params):
    """Pure-JAX reference with the same bf16 inputs / f32 accumulation as the kernel."""
    def bf(a):
        return a.astype(jnp.bfloat16)
    h = jnp.dot(bf(x), bf(params["w1"]), preferred_element_type=jnp.float32) + params["b1"]
    h = jnp.maximum(h, 0.0)
    h = jnp.dot(bf(h), bf(params["w2"]), preferred_element_type=jnp.float32) + params["b2"]
    h = jnp.where(h >= 0, h, 0.01 * h)
    h = jnp.dot(bf(h), bf(params["w3"]), preferred_element_type=jnp.float32) + params["b3"]
    h = jnp.where(h >= 0, h, 0.01 * h)
    logits = jnp.dot(bf(h), bf(params["w4"]), preferred_element_type=jnp.float32) + params["b4"]
    return jax.nn.softmax(logits, axis=1)


if __name__ == "__main__":
    key = jax.random.PRNGKey(0)
    batch, input_dim, num_experts = 8, 32, 4

    key, kx, kp = jax.random.split(key, 3)
    x = jax.random.normal(kx, (batch, input_dim), jnp.float32)
    params = init_params(kp, input_dim, num_experts)

    out = gating_forward(x, params)
    jax.block_until_ready(out)

    ref = gating_reference(x, params)
    assert out.shape == (batch, num_experts)
    # bf16 matmuls + approx reciprocal in the softmax epilogue -> a few e-4 abs error.
    assert jnp.allclose(out, ref, atol=5e-3, rtol=5e-3), "mismatch vs reference"
    assert jnp.allclose(jnp.sum(out, axis=1), 1.0, atol=5e-3), "softmax rows must sum to 1"

    print("KERNEL_OK")
</pallas_src>

<mosaic_0001>
module attributes {stable_mosaic.version = 11 : i64} {
  func.func @_gating_kernel(%arg0: i32, %arg1: memref<16x128xbf16, #tpu.memory_space<vmem>>, %arg2: memref<128x128xbf16, #tpu.memory_space<vmem>>, %arg3: memref<1x128xf32, #tpu.memory_space<vmem>>, %arg4: memref<128x256xbf16, #tpu.memory_space<vmem>>, %arg5: memref<1x256xf32, #tpu.memory_space<vmem>>, %arg6: memref<256x128xbf16, #tpu.memory_space<vmem>>, %arg7: memref<1x128xf32, #tpu.memory_space<vmem>>, %arg8: memref<128x128xbf16, #tpu.memory_space<vmem>>, %arg9: memref<1x128xf32, #tpu.memory_space<vmem>>, %arg10: memref<16x128xf32, #tpu.memory_space<vmem>>) attributes {dimension_semantics = [#tpu.dimension_semantics<parallel>], iteration_bounds = array<i64: 1>, scalar_prefetch = 0 : i64, scratch_operands = 0 : i64, tpu.core_type = #tpu.core_type<tc>, window_params = [{transform_indices = @transform_0, window_bounds = array<i64: 16, 128>}, {pipeline_mode = #tpu.pipeline_mode<synchronous>, transform_indices = @transform_1, window_bounds = array<i64: 128, 128>}, {pipeline_mode = #tpu.pipeline_mode<synchronous>, transform_indices = @transform_2, window_bounds = array<i64: 1, 128>}, {pipeline_mode = #tpu.pipeline_mode<synchronous>, transform_indices = @transform_3, window_bounds = array<i64: 128, 256>}, {pipeline_mode = #tpu.pipeline_mode<synchronous>, transform_indices = @transform_4, window_bounds = array<i64: 1, 256>}, {pipeline_mode = #tpu.pipeline_mode<synchronous>, transform_indices = @transform_5, window_bounds = array<i64: 256, 128>}, {pipeline_mode = #tpu.pipeline_mode<synchronous>, transform_indices = @transform_6, window_bounds = array<i64: 1, 128>}, {pipeline_mode = #tpu.pipeline_mode<synchronous>, transform_indices = @transform_7, window_bounds = array<i64: 128, 128>}, {pipeline_mode = #tpu.pipeline_mode<synchronous>, transform_indices = @transform_8, window_bounds = array<i64: 1, 128>}, {transform_indices = @transform_9, window_bounds = array<i64: 16, 128>}]} {
    %c0 = arith.constant 0 : index
    %c0_0 = arith.constant 0 : index
    %0 = vector.load %arg1[%c0, %c0_0] : memref<16x128xbf16, #tpu.memory_space<vmem>>, vector<16x128xbf16>
    %c0_1 = arith.constant 0 : index
    %c0_2 = arith.constant 0 : index
    %1 = vector.load %arg2[%c0_1, %c0_2] : memref<128x128xbf16, #tpu.memory_space<vmem>>, vector<128x128xbf16>
    %cst = arith.constant dense<0.000000e+00> : vector<16x128xf32>
    %2 = tpu.matmul %0, %1, %cst {dimension_numbers = #tpu.dot_dimension_numbers<[1], [0], [0], [1], [0, 0, 1, 1], [], []>} : vector<16x128xbf16>, vector<128x128xbf16>, vector<16x128xf32> -> vector<16x128xf32>
    %c0_3 = arith.constant 0 : index
    %c0_4 = arith.constant 0 : index
    %3 = vector.load %arg3[%c0_3, %c0_4] : memref<1x128xf32, #tpu.memory_space<vmem>>, vector<1x128xf32>
    %4 = vector.broadcast %3 : vector<1x128xf32> to vector<16x128xf32>
    %5 = arith.addf %2, %4 : vector<16x128xf32>
    %cst_5 = arith.constant 0.000000e+00 : f32
    %6 = vector.broadcast %cst_5 : f32 to vector<16x128xf32>
    %7 = arith.maximumf %5, %6 : vector<16x128xf32>
    %8 = arith.truncf %7 : vector<16x128xf32> to vector<16x128xbf16>
    %c0_6 = arith.constant 0 : index
    %c0_7 = arith.constant 0 : index
    %9 = vector.load %arg4[%c0_6, %c0_7] : memref<128x256xbf16, #tpu.memory_space<vmem>>, vector<128x256xbf16>
    %cst_8 = arith.constant dense<0.000000e+00> : vector<16x256xf32>
    %10 = tpu.matmul %8, %9, %cst_8 {dimension_numbers = #tpu.dot_dimension_numbers<[1], [0], [0], [1], [0, 0, 1, 1], [], []>} : vector<16x128xbf16>, vector<128x256xbf16>, vector<16x256xf32> -> vector<16x256xf32>
    %c0_9 = arith.constant 0 : index
    %c0_10 = arith.constant 0 : index
    %11 = vector.load %arg5[%c0_9, %c0_10] : memref<1x256xf32, #tpu.memory_space<vmem>>, vector<1x256xf32>
    %12 = vector.broadcast %11 : vector<1x256xf32> to vector<16x256xf32>
    %13 = arith.addf %10, %12 : vector<16x256xf32>
    %cst_11 = arith.constant 0.00999999977 : f32
    %14 = vector.broadcast %cst_11 : f32 to vector<16x256xf32>
    %15 = arith.mulf %14, %13 : vector<16x256xf32>
    %16 = arith.maximumf %13, %15 : vector<16x256xf32>
    %17 = arith.truncf %16 : vector<16x256xf32> to vector<16x256xbf16>
    %c0_12 = arith.constant 0 : index
    %c0_13 = arith.constant 0 : index
    %18 = vector.load %arg6[%c0_12, %c0_13] : memref<256x128xbf16, #tpu.memory_space<vmem>>, vector<256x128xbf16>
    %cst_14 = arith.constant dense<0.000000e+00> : vector<16x128xf32>
    %19 = tpu.matmul %17, %18, %cst_14 {dimension_numbers = #tpu.dot_dimension_numbers<[1], [0], [0], [1], [0, 0, 1, 1], [], []>} : vector<16x256xbf16>, vector<256x128xbf16>, vector<16x128xf32> -> vector<16x128xf32>
    %c0_15 = arith.constant 0 : index
    %c0_16 = arith.constant 0 : index
    %20 = vector.load %arg7[%c0_15, %c0_16] : memref<1x128xf32, #tpu.memory_space<vmem>>, vector<1x128xf32>
    %21 = vector.broadcast %20 : vector<1x128xf32> to vector<16x128xf32>
    %22 = arith.addf %19, %21 : vector<16x128xf32>
    %cst_17 = arith.constant 0.00999999977 : f32
    %23 = vector.broadcast %cst_17 : f32 to vector<16x128xf32>
    %24 = arith.mulf %23, %22 : vector<16x128xf32>
    %25 = arith.maximumf %22, %24 : vector<16x128xf32>
    %26 = arith.truncf %25 : vector<16x128xf32> to vector<16x128xbf16>
    %c0_18 = arith.constant 0 : index
    %c0_19 = arith.constant 0 : index
    %27 = vector.load %arg8[%c0_18, %c0_19] : memref<128x128xbf16, #tpu.memory_space<vmem>>, vector<128x128xbf16>
    %cst_20 = arith.constant dense<0.000000e+00> : vector<16x128xf32>
    %28 = tpu.matmul %26, %27, %cst_20 {dimension_numbers = #tpu.dot_dimension_numbers<[1], [0], [0], [1], [0, 0, 1, 1], [], []>} : vector<16x128xbf16>, vector<128x128xbf16>, vector<16x128xf32> -> vector<16x128xf32>
    %c0_21 = arith.constant 0 : index
    %c0_22 = arith.constant 0 : index
    %29 = vector.load %arg9[%c0_21, %c0_22] : memref<1x128xf32, #tpu.memory_space<vmem>>, vector<1x128xf32>
    %30 = vector.broadcast %29 : vector<1x128xf32> to vector<16x128xf32>
    %31 = arith.addf %28, %30 : vector<16x128xf32>
    %cst_23 = arith.constant dense<0xFF800000> : vector<16xf32>
    %32 = vector.multi_reduction <maximumf>, %31, %cst_23 [1] : vector<16x128xf32> to vector<16xf32>
    %33 = vector.shape_cast %32 : vector<16xf32> to vector<16x1xf32>
    %34 = vector.broadcast %33 : vector<16x1xf32> to vector<16x128xf32>
    %35 = arith.subf %31, %34 : vector<16x128xf32>
    %36 = math.exp %35 : vector<16x128xf32>
    %cst_24 = arith.constant dense<0.000000e+00> : vector<16xf32>
    %37 = vector.multi_reduction <add>, %36, %cst_24 [1] : vector<16x128xf32> to vector<16xf32>
    %38 = vector.shape_cast %37 : vector<16xf32> to vector<16x1xf32>
    %39 = tpu.reciprocal %38 {approx = true} : vector<16x1xf32> -> vector<16x1xf32>
    %40 = vector.broadcast %39 : vector<16x1xf32> to vector<16x128xf32>
    %41 = arith.mulf %36, %40 : vector<16x128xf32>
    %c0_25 = arith.constant 0 : index
    %c0_26 = arith.constant 0 : index
    %42 = vector.load %arg10[%c0_25, %c0_26] : memref<16x128xf32, #tpu.memory_space<vmem>>, vector<16x128xf32>
    tpu.vector_store %arg10[%c0_25, %c0_26], %41 {strides = array<i32>} : memref<16x128xf32, #tpu.memory_space<vmem>>, vector<16x128xf32>,
    return
  }
  func.func @transform_0(%arg0: i32) -> (i32, i32) {
    %c0_i32 = arith.constant 0 : i32
    %c0_i32_0 = arith.constant 0 : i32
    return %arg0, %c0_i32 : i32, i32
  }
  func.func @transform_1(%arg0: i32) -> (i32, i32) {
    %c0_i32 = arith.constant 0 : i32
    %c0_i32_0 = arith.constant 0 : i32
    %c0_i32_1 = arith.constant 0 : i32
    return %c0_i32, %c0_i32_0 : i32, i32
  }
  func.func @transform_2(%arg0: i32) -> (i32, i32) {
    %c0_i32 = arith.constant 0 : i32
    %c0_i32_0 = arith.constant 0 : i32
    %c0_i32_1 = arith.constant 0 : i32
    return %c0_i32, %c0_i32_0 : i32, i32
  }
  func.func @transform_3(%arg0: i32) -> (i32, i32) {
    %c0_i32 = arith.constant 0 : i32
    %c0_i32_0 = arith.constant 0 : i32
    %c0_i32_1 = arith.constant 0 : i32
    return %c0_i32, %c0_i32_0 : i32, i32
  }
  func.func @transform_4(%arg0: i32) -> (i32, i32) {
    %c0_i32 = arith.constant 0 : i32
    %c0_i32_0 = arith.constant 0 : i32
    %c0_i32_1 = arith.constant 0 : i32
    return %c0_i32, %c0_i32_0 : i32, i32
  }
  func.func @transform_5(%arg0: i32) -> (i32, i32) {
    %c0_i32 = arith.constant 0 : i32
    %c0_i32_0 = arith.constant 0 : i32
    %c0_i32_1 = arith.constant 0 : i32
    return %c0_i32, %c0_i32_0 : i32, i32
  }
  func.func @transform_6(%arg0: i32) -> (i32, i32) {
    %c0_i32 = arith.constant 0 : i32
    %c0_i32_0 = arith.constant 0 : i32
    %c0_i32_1 = arith.constant 0 : i32
    return %c0_i32, %c0_i32_0 : i32, i32
  }
  func.func @transform_7(%arg0: i32) -> (i32, i32) {
    %c0_i32 = arith.constant 0 : i32
    %c0_i32_0 = arith.constant 0 : i32
    %c0_i32_1 = arith.constant 0 : i32
    return %c0_i32, %c0_i32_0 : i32, i32
  }
  func.func @transform_8(%arg0: i32) -> (i32, i32) {
    %c0_i32 = arith.constant 0 : i32
    %c0_i32_0 = arith.constant 0 : i32
    %c0_i32_1 = arith.constant 0 : i32
    return %c0_i32, %c0_i32_0 : i32, i32
  }
  func.func @transform_9(%arg0: i32) -> (i32, i32) {
    %c0_i32 = arith.constant 0 : i32
    %c0_i32_0 = arith.constant 0 : i32
    return %arg0, %c0_i32 : i32, i32
  }
}

</mosaic_0001>

<llo_original>
// kernel: tpu_custom_call.1
$region0: #{tpu_custom_call.1}
  #allocation0 [shape = 'u32[]', space=smem, size = 0x4, offset = 0x4, fixed_abs, tag = 'smem constant byte address 0x4 - core index']
  #allocation1 [shape = 'u32[72,128]{1,0:T(1,128)}', space=vmem, size = 0x9000, scoped, tag = 'internal scratch']
  %s0 = inlined_call_operand.hbm [shape: bf16[16,128], index: 0, kind: input, shape index: {}]
  %s1 = inlined_call_operand.hbm [shape: bf16[128,128], index: 1, kind: input, shape index: {}]
  %s2 = inlined_call_operand.vmem [shape: f32[1,128], index: 2, kind: input, shape index: {}]
  %s3 = inlined_call_operand.hbm [shape: bf16[128,256], index: 3, kind: input, shape index: {}]
  %s4 = inlined_call_operand.vmem [shape: f32[1,256], index: 4, kind: input, shape index: {}]
  %s5 = inlined_call_operand.hbm [shape: bf16[256,128], index: 5, kind: input, shape index: {}]
  %s6 = inlined_call_operand.vmem [shape: f32[1,128], index: 6, kind: input, shape index: {}]
  %s7 = inlined_call_operand.hbm [shape: bf16[128,128], index: 7, kind: input, shape index: {}]
  %s8 = inlined_call_operand.vmem [shape: f32[1,128], index: 8, kind: input, shape index: {}]
  %s9 = inlined_call_operand.hbm [shape: f32[16,128], index: 9, kind: output, shape index: {}]
  %s10 = sld [smem:[#allocation0]]
  $region66: #{tpu_custom_call.1} parent=0
    _
  %s12 = ssub.s32 1, %s10
  %s13 = scalar_select 0, %s12, %s10
  $region1: #{tpu_custom_call.1} parent=0
    #allocation2 [shape = 'u8[4096]{0}', space=vmem, size = 0x1000, scoped, tag = 'input window, operand 0, single buffered']
    #allocation3 [shape = 's32[1]{0}', space=sflag, size = 0x4, scoped, tag = 'scoped memory for tpu_custom_call.1']
    #allocation4 [shape = 's32[1]{0}', space=sflag, size = 0x4, scoped, tag = 'scoped memory for tpu_custom_call.1']
    #allocation5 [shape = 'u8[32768]{0}', space=vmem, size = 0x8000, scoped, tag = 'input window, operand 1, single buffered']
    #allocation6 [shape = 's32[1]{0}', space=sflag, size = 0x4, scoped, tag = 'scoped memory for tpu_custom_call.1']
    #allocation7 [shape = 'u8[65536]{0}', space=vmem, size = 0x10000, scoped, tag = 'input window, operand 3, single buffered']
    #allocation8 [shape = 'u8[65536]{0}', space=vmem, size = 0x10000, scoped, tag = 'input window, operand 5, single buffered']
    #allocation9 [shape = 's32[1]{0}', space=sflag, size = 0x4, scoped, tag = 'scoped memory for tpu_custom_call.1']
    #allocation10 [shape = 'u8[32768]{0}', space=vmem, size = 0x8000, scoped, tag = 'input window, operand 7, single buffered']
    #allocation11 [shape = 'u8[8192]{0}', space=vmem, size = 0x2000, scoped, tag = 'output window, operand 0, single buffered']
    %14 = vsyncpa [#allocation3], 0
    %15 = vsyncpa [#allocation6], 0
    %16 = vsyncpa [#allocation9], 0
    %17 = vsyncpa [#allocation4], 0
    // Predicated region
    $region2: #{tpu_custom_call.1} parent=1 // pred_check
      _
    $region3: #{tpu_custom_call.1} parent=1 // pred_check_branch
      %19 = sbr.rel (0) target = $region5
    $region4: #{tpu_custom_call.1} parent=1 // pred_region
      %21 = vsyncadd [#allocation3], 0
      %s22 = sshll.u32 %s0, 4
      %s23 = int_to_ptr.hbm [resolvable:$true] %s22
      %s24 = sshll.u32 [#allocation2], 4
      %s25 = int_to_ptr.vmem [resolvable:$true] %s24
      %30 = dma.hbm_to_vmem [thread:$0]  %s23, 128, %s25, [#allocation3], 64, 64, 4
    $region5: #{tpu_custom_call.1} parent=1 // pred_fallthru
      _
    // Predicated region
    $region6: #{tpu_custom_call.1} parent=1 // pred_check
      _
    $region7: #{tpu_custom_call.1} parent=1 // pred_check_branch
      %32 = sbr.rel (0) target = $region9
    $region8: #{tpu_custom_call.1} parent=1 // pred_region
      %34 = vsyncadd [#allocation6], 0
      %s35 = sshll.u32 %s1, 4
      %s36 = int_to_ptr.hbm [resolvable:$true] %s35
      %s37 = sshll.u32 [#allocation5], 4
      %s38 = int_to_ptr.vmem [resolvable:$true] %s37
      %43 = dma.hbm_to_vmem [thread:$0]  %s36, 1024, %s38, [#allocation6], 64, 64, 4
    $region9: #{tpu_custom_call.1} parent=1 // pred_fallthru
      _
    // Predicated region
    $region10: #{tpu_custom_call.1} parent=1 // pred_check
      _
    $region11: #{tpu_custom_call.1} parent=1 // pred_check_branch
      %45 = sbr.rel (0) target = $region13
    $region12: #{tpu_custom_call.1} parent=1 // pred_region
      _
    $region13: #{tpu_custom_call.1} parent=1 // pred_fallthru
      _
    // Predicated region
    $region14: #{tpu_custom_call.1} parent=1 // pred_check
      _
    $region15: #{tpu_custom_call.1} parent=1 // pred_check_branch
      %47 = sbr.rel (0) target = $region17
    $region16: #{tpu_custom_call.1} parent=1 // pred_region
      %49 = vsyncadd [#allocation6], 0
      %s50 = sshll.u32 %s3, 4
      %s51 = int_to_ptr.hbm [resolvable:$true] %s50
      %s52 = sshll.u32 [#allocation7], 4
      %s53 = int_to_ptr.vmem [resolvable:$true] %s52
      %58 = dma.hbm_to_vmem [thread:$0]  %s51, 2048, %s53, [#allocation6], 128, 128, 8
    $region17: #{tpu_custom_call.1} parent=1 // pred_fallthru
      _
    // Predicated region
    $region18: #{tpu_custom_call.1} parent=1 // pred_check
      _
    $region19: #{tpu_custom_call.1} parent=1 // pred_check_branch
      %60 = sbr.rel (0) target = $region21
    $region20: #{tpu_custom_call.1} parent=1 // pred_region
      _
    $region21: #{tpu_custom_call.1} parent=1 // pred_fallthru
      _
    // Predicated region
    $region22: #{tpu_custom_call.1} parent=1 // pred_check
      _
    $region23: #{tpu_custom_call.1} parent=1 // pred_check_branch
      %62 = sbr.rel (0) target = $region25
    $region24: #{tpu_custom_call.1} parent=1 // pred_region
      %64 = vsyncadd [#allocation9], 0
      %s65 = sshll.u32 %s5, 4
      %s66 = int_to_ptr.hbm [resolvable:$true] %s65
      %s67 = sshll.u32 [#allocation8], 4
      %s68 = int_to_ptr.vmem [resolvable:$true] %s67
      %73 = dma.hbm_to_vmem [thread:$0]  %s66, 2048, %s68, [#allocation9], 64, 64, 4
    $region25: #{tpu_custom_call.1} parent=1 // pred_fallthru
      _
    // Predicated region
    $region26: #{tpu_custom_call.1} parent=1 // pred_check
      _
    $region27: #{tpu_custom_call.1} parent=1 // pred_check_branch
      %75 = sbr.rel (0) target = $region29
    $region28: #{tpu_custom_call.1} parent=1 // pred_region
      _
    $region29: #{tpu_custom_call.1} parent=1 // pred_fallthru
      _
    // Predicated region
    $region30: #{tpu_custom_call.1} parent=1 // pred_check
      _
    $region31: #{tpu_custom_call.1} parent=1 // pred_check_branch
      %77 = sbr.rel (0) target = $region33
    $region32: #{tpu_custom_call.1} parent=1 // pred_region
      %79 = vsyncadd [#allocation9], 0
      %s80 = sshll.u32 %s7, 4
      %s81 = int_to_ptr.hbm [resolvable:$true] %s80
      %s82 = sshll.u32 [#allocation10], 4
      %s83 = int_to_ptr.vmem [resolvable:$true] %s82
      %88 = dma.hbm_to_vmem [thread:$0]  %s81, 1024, %s83, [#allocation9], 64, 64, 4
    $region33: #{tpu_custom_call.1} parent=1 // pred_fallthru
      _
    // Predicated region
    $region34: #{tpu_custom_call.1} parent=1 // pred_check
      _
    $region35: #{tpu_custom_call.1} parent=1 // pred_check_branch
      %90 = sbr.rel (0) target = $region37
    $region36: #{tpu_custom_call.1} parent=1 // pred_region
      _
    $region37: #{tpu_custom_call.1} parent=1 // pred_fallthru
      _
    // Predicated region
    $region38: #{tpu_custom_call.1} parent=1 // pred_check
      _
    $region39: #{tpu_custom_call.1} parent=1 // pred_check_branch
      %92 = sbr.rel (0) target = $region41
    $region40: #{tpu_custom_call.1} parent=1 // pred_region
      %94 = dma.done [#allocation3], 128
    $region41: #{tpu_custom_call.1} parent=1 // pred_fallthru
      _
    // Predicated region
    $region42: #{tpu_custom_call.1} parent=1 // pred_check
      _
    $region43: #{tpu_custom_call.1} parent=1 // pred_check_branch
      %96 = sbr.rel (0) target = $region45
    $region44: #{tpu_custom_call.1} parent=1 // pred_region
      %98 = dma.done [#allocation6], 1024
    $region45: #{tpu_custom_call.1} parent=1 // pred_fallthru
      _
    // Predicated region
    $region46: #{tpu_custom_call.1} parent=1 // pred_check
      _
    $region47: #{tpu_custom_call.1} parent=1 // pred_check_branch
      %100 = sbr.rel (0) target = $region49
    $region48: #{tpu_custom_call.1} parent=1 // pred_region
      %102 = dma.done [#allocation6], 2048
    $region49: #{tpu_custom_call.1} parent=1 // pred_fallthru
      _
    // Predicated region
    $region50: #{tpu_custom_call.1} parent=1 // pred_check
      _
    $region51: #{tpu_custom_call.1} parent=1 // pred_check_branch
      %104 = sbr.rel (0) target = $region53
    $region52: #{tpu_custom_call.1} parent=1 // pred_region
      %106 = dma.done [#allocation9], 2048
    $region53: #{tpu_custom_call.1} parent=1 // pred_fallthru
      _
    // Predicated region
    $region54: #{tpu_custom_call.1} parent=1 // pred_check
      _
    $region55: #{tpu_custom_call.1} parent=1 // pred_check_branch
      %108 = sbr.rel (0) target = $region57
    $region56: #{tpu_custom_call.1} parent=1 // pred_region
      %110 = dma.done [#allocation9], 1024
    $region57: #{tpu_custom_call.1} parent=1 // pred_fallthru
      _
    %v111 = vld [vmem:[#allocation2] sm:$0xf]
    %v112 = vld [vmem:[#allocation2 + $0x4] sm:$0xf]
    %v113 = vld [vmem:[#allocation5] sm:$0xf]
    %v114 = vld [vmem:[#allocation5 + $0x4] sm:$0xf]
    %v115 = vld [vmem:[#allocation5 + $0x8] sm:$0xf]
    %v116 = vld [vmem:[#allocation5 + $0xc] sm:$0xf]
    %v117 = vld [vmem:[#allocation5 + $0x10] sm:$0xf]
    %v118 = vld [vmem:[#allocation5 + $0x14] sm:$0xf]
    %v119 = vld [vmem:[#allocation5 + $0x18] sm:$0xf]
    %v120 = vld [vmem:[#allocation5 + $0x1c] sm:$0xf]
    %v121 = vld [vmem:[#allocation5 + $0x20] sm:$0xf]
    %v122 = vld [vmem:[#allocation5 + $0x24] sm:$0xf]
    %v123 = vld [vmem:[#allocation5 + $0x28] sm:$0xf]
    %v124 = vld [vmem:[#allocation5 + $0x2c] sm:$0xf]
    %v125 = vld [vmem:[#allocation5 + $0x30] sm:$0xf]
    %v126 = vld [vmem:[#allocation5 + $0x34] sm:$0xf]
    %v127 = vld [vmem:[#allocation5 + $0x38] sm:$0xf]
    %v128 = vld [vmem:[#allocation5 + $0x3c] sm:$0xf]
    %v129 = vld [vmem:[%s2] sm:$0x1]
    %v131 = vperm.slane %v129, 0
    %v135 = vunpack.c.l.b16 %v111
    %v136 = vunpack.c.l.b16 %v112
    %v137 = vpack.c.b16 %v136, %v135
    %v155 = vunpack.c.l.b16 %v113
    %v156 = vunpack.c.l.b16 %v114
    %v157 = vunpack.c.l.b16 %v115
    %v158 = vunpack.c.l.b16 %v116
    %v159 = vunpack.c.l.b16 %v117
    %v160 = vunpack.c.l.b16 %v118
    %v161 = vunpack.c.l.b16 %v119
    %v162 = vunpack.c.l.b16 %v120
    %v163 = vunpack.c.l.b16 %v121
    %v164 = vunpack.c.l.b16 %v122
    %v165 = vunpack.c.l.b16 %v123
    %v166 = vunpack.c.l.b16 %v124
    %v167 = vunpack.c.l.b16 %v125
    %v168 = vunpack.c.l.b16 %v126
    %v169 = vunpack.c.l.b16 %v127
    %v170 = vunpack.c.l.b16 %v128
    %v171 = vpack.c.b16 %v156, %v155
    %v172 = vpack.c.b16 %v158, %v157
    %v173 = vpack.c.b16 %v160, %v159
    %v174 = vpack.c.b16 %v162, %v161
    %v175 = vpack.c.b16 %v164, %v163
    %v176 = vpack.c.b16 %v166, %v165
    %v177 = vpack.c.b16 %v168, %v167
    %v178 = vpack.c.b16 %v170, %v169
    %187 = vmatpush.bf16.msra.mxu0 %v178
    %188 = vmatpush.bf16.msra.mxu0 %v177
    %189 = vmatpush.bf16.msra.mxu0 %v176
    %190 = vmatpush.bf16.msra.mxu0 %v175
    %191 = vmatpush.bf16.msra.mxu0 %v174
    %192 = vmatpush.bf16.msra.mxu0 %v173
    %193 = vmatpush.bf16.msra.mxu0 %v172
    %194 = vmatpush.bf16.msra.mxu0 %v171
    %195 = vmatmul.bf16.gmra.mxu0 %v137
    %v196 = vpop.f32.mrf.mxu0
    %v197 = vadd.f32 %v131, %v196
    %v198 = vpop.f32.mrf.mxu0
    %v199 = vadd.f32 %v131, %v198
    %200 = vdwg.mxu0
    %v201 = vmax.f32 %v197, 0.0
    %v202 = vmax.f32 %v199, 0.0
    %v203 = vpack.c.bf16 %v202, %v201
    %v204 = vld [vmem:[#allocation7] sm:$0xff]
    %v205 = vld [vmem:[#allocation7 + $0x8] sm:$0xff]
    %v206 = vld [vmem:[#allocation7 + $0x10] sm:$0xff]
    %v207 = vld [vmem:[#allocation7 + $0x18] sm:$0xff]
    %v208 = vld [vmem:[#allocation7 + $0x20] sm:$0xff]
    %v209 = vld [vmem:[#allocation7 + $0x28] sm:$0xff]
    %v210 = vld [vmem:[#allocation7 + $0x30] sm:$0xff]
    %v211 = vld [vmem:[#allocation7 + $0x38] sm:$0xff]
    %v212 = vld [vmem:[#allocation7 + $0x40] sm:$0xff]
    %v213 = vld [vmem:[#allocation7 + $0x48] sm:$0xff]
    %v214 = vld [vmem:[#allocation7 + $0x50] sm:$0xff]
    %v215 = vld [vmem:[#allocation7 + $0x58] sm:$0xff]
    %v216 = vld [vmem:[#allocation7 + $0x60] sm:$0xff]
    %v217 = vld [vmem:[#allocation7 + $0x68] sm:$0xff]
    %v218 = vld [vmem:[#allocation7 + $0x70] sm:$0xff]
    %v219 = vld [vmem:[#allocation7 + $0x78] sm:$0xff]
    %v220 = vld [vmem:[%s4] sm:$0x3]
    %v222 = vperm.slane %v220, 0
    %v223 = vperm.slane %v220, 1
    %v242 = vunpack.c.l.b16 %v204
    %v243 = vunpack.c.h.b16 %v204
    %v244 = vunpack.c.l.b16 %v205
    %v245 = vunpack.c.h.b16 %v205
    %v246 = vunpack.c.l.b16 %v206
    %v247 = vunpack.c.h.b16 %v206
    %v248 = vunpack.c.l.b16 %v207
    %v249 = vunpack.c.h.b16 %v207
    %v250 = vunpack.c.l.b16 %v208
    %v251 = vunpack.c.h.b16 %v208
    %v252 = vunpack.c.l.b16 %v209
    %v253 = vunpack.c.h.b16 %v209
    %v254 = vunpack.c.l.b16 %v210
    %v255 = vunpack.c.h.b16 %v210
    %v256 = vunpack.c.l.b16 %v211
    %v257 = vunpack.c.h.b16 %v211
    %v258 = vunpack.c.l.b16 %v212
    %v259 = vunpack.c.h.b16 %v212
    %v260 = vunpack.c.l.b16 %v213
    %v261 = vunpack.c.h.b16 %v213
    %v262 = vunpack.c.l.b16 %v214
    %v263 = vunpack.c.h.b16 %v214
    %v264 = vunpack.c.l.b16 %v215
    %v265 = vunpack.c.h.b16 %v215
    %v266 = vunpack.c.l.b16 %v216
    %v267 = vunpack.c.h.b16 %v216
    %v268 = vunpack.c.l.b16 %v217
    %v269 = vunpack.c.h.b16 %v217
    %v270 = vunpack.c.l.b16 %v218
    %v271 = vunpack.c.h.b16 %v218
    %v272 = vunpack.c.l.b16 %v219
    %v273 = vunpack.c.h.b16 %v219
    %v274 = vpack.c.b16 %v244, %v242
    %v275 = vpack.c.b16 %v245, %v243
    %v276 = vpack.c.b16 %v248, %v246
    %v277 = vpack.c.b16 %v249, %v247
    %v278 = vpack.c.b16 %v252, %v250
    %v279 = vpack.c.b16 %v253, %v251
    %v280 = vpack.c.b16 %v256, %v254
    %v281 = vpack.c.b16 %v257, %v255
    %v282 = vpack.c.b16 %v260, %v258
    %v283 = vpack.c.b16 %v261, %v259
    %v284 = vpack.c.b16 %v264, %v262
    %v285 = vpack.c.b16 %v265, %v263
    %v286 = vpack.c.b16 %v268, %v266
    %v287 = vpack.c.b16 %v269, %v267
    %v288 = vpack.c.b16 %v272, %v270
    %v289 = vpack.c.b16 %v273, %v271
    %306 = vmatpush.bf16.msra.mxu0 %v288
    %307 = vmatpush.bf16.msra.mxu0 %v286
    %308 = vmatpush.bf16.msra.mxu0 %v284
    %309 = vmatpush.bf16.msra.mxu0 %v282
    %310 = vmatpush.bf16.msra.mxu0 %v280
    %311 = vmatpush.bf16.msra.mxu0 %v278
    %312 = vmatpush.bf16.msra.mxu0 %v276
    %313 = vmatpush.bf16.msra.mxu0 %v274
    %314 = vmatmul.bf16.gmra.mxu0 %v203
    %v315 = vpop.f32.mrf.mxu0
    %v316 = vadd.f32 %v222, %v315
    %v317 = vpop.f32.mrf.mxu0
    %v318 = vadd.f32 %v222, %v317
    %319 = vdwg.mxu0
    %320 = vmatpush.bf16.msra.mxu0 %v289
    %321 = vmatpush.bf16.msra.mxu0 %v287
    %322 = vmatpush.bf16.msra.mxu0 %v285
    %323 = vmatpush.bf16.msra.mxu0 %v283
    %324 = vmatpush.bf16.msra.mxu0 %v281
    %325 = vmatpush.bf16.msra.mxu0 %v279
    %326 = vmatpush.bf16.msra.mxu0 %v277
    %327 = vmatpush.bf16.msra.mxu0 %v275
    %328 = vmatmul.bf16.gmra.mxu0 %v203
    %v329 = vpop.f32.mrf.mxu0
    %v330 = vadd.f32 %v223, %v329
    %v331 = vpop.f32.mrf.mxu0
    %v332 = vadd.f32 %v223, %v331
    %333 = vdwg.mxu0
    %v334 = vmul.f32 %v316, 0.01
    %v335 = vmul.f32 %v330, 0.01
    %v336 = vmul.f32 %v318, 0.01
    %v337 = vmul.f32 %v332, 0.01
    %v338 = vmax.f32 %v316, %v334
    %v339 = vmax.f32 %v330, %v335
    %v340 = vmax.f32 %v318, %v336
    %v341 = vmax.f32 %v332, %v337
    %v342 = vpack.c.bf16 %v340, %v338
    %v343 = vpack.c.bf16 %v341, %v339
    %v344 = vld [vmem:[#allocation8] sm:$0xf]
    %v345 = vld [vmem:[#allocation8 + $0x4] sm:$0xf]
    %v346 = vld [vmem:[#allocation8 + $0x8] sm:$0xf]
    %v347 = vld [vmem:[#allocation8 + $0xc] sm:$0xf]
    %v348 = vld [vmem:[#allocation8 + $0x10] sm:$0xf]
    %v349 = vld [vmem:[#allocation8 + $0x14] sm:$0xf]
    %v350 = vld [vmem:[#allocation8 + $0x18] sm:$0xf]
    %v351 = vld [vmem:[#allocation8 + $0x1c] sm:$0xf]
    %v352 = vld [vmem:[#allocation8 + $0x20] sm:$0xf]
    %v353 = vld [vmem:[#allocation8 + $0x24] sm:$0xf]
    %v354 = vld [vmem:[#allocation8 + $0x28] sm:$0xf]
    %v355 = vld [vmem:[#allocation8 + $0x2c] sm:$0xf]
    %v356 = vld [vmem:[#allocation8 + $0x30] sm:$0xf]
    %v357 = vld [vmem:[#allocation8 + $0x34] sm:$0xf]
    %v358 = vld [vmem:[#allocation8 + $0x38] sm:$0xf]
    %v359 = vld [vmem:[#allocation8 + $0x3c] sm:$0xf]
    %v360 = vld [vmem:[#allocation8 + $0x40] sm:$0xf]
    %v361 = vld [vmem:[#allocation8 + $0x44] sm:$0xf]
    %v362 = vld [vmem:[#allocation8 + $0x48] sm:$0xf]
    %v363 = vld [vmem:[#allocation8 + $0x4c] sm:$0xf]
    %v364 = vld [vmem:[#allocation8 + $0x50] sm:$0xf]
    %v365 = vld [vmem:[#allocation8 + $0x54] sm:$0xf]
    %v366 = vld [vmem:[#allocation8 + $0x58] sm:$0xf]
    %v367 = vld [vmem:[#allocation8 + $0x5c] sm:$0xf]
    %v368 = vld [vmem:[#allocation8 + $0x60] sm:$0xf]
    %v369 = vld [vmem:[#allocation8 + $0x64] sm:$0xf]
    %v370 = vld [vmem:[#allocation8 + $0x68] sm:$0xf]
    %v371 = vld [vmem:[#allocation8 + $0x6c] sm:$0xf]
    %v372 = vld [vmem:[#allocation8 + $0x70] sm:$0xf]
    %v373 = vld [vmem:[#allocation8 + $0x74] sm:$0xf]
    %v374 = vld [vmem:[#allocation8 + $0x78] sm:$0xf]
    %v375 = vld [vmem:[#allocation8 + $0x7c] sm:$0xf]
    %v376 = vld [vmem:[%s6] sm:$0x1]
    %v378 = vperm.slane %v376, 0
    %v412 = vunpack.c.l.b16 %v344
    %v413 = vunpack.c.l.b16 %v345
    %v414 = vunpack.c.l.b16 %v346
    %v415 = vunpack.c.l.b16 %v347
    %v416 = vunpack.c.l.b16 %v348
    %v417 = vunpack.c.l.b16 %v349
    %v418 = vunpack.c.l.b16 %v350
    %v419 = vunpack.c.l.b16 %v351
    %v420 = vunpack.c.l.b16 %v352
    %v421 = vunpack.c.l.b16 %v353
    %v422 = vunpack.c.l.b16 %v354
    %v423 = vunpack.c.l.b16 %v355
    %v424 = vunpack.c.l.b16 %v356
    %v425 = vunpack.c.l.b16 %v357
    %v426 = vunpack.c.l.b16 %v358
    %v427 = vunpack.c.l.b16 %v359
    %v428 = vunpack.c.l.b16 %v360
    %v429 = vunpack.c.l.b16 %v361
    %v430 = vunpack.c.l.b16 %v362
    %v431 = vunpack.c.l.b16 %v363
    %v432 = vunpack.c.l.b16 %v364
    %v433 = vunpack.c.l.b16 %v365
    %v434 = vunpack.c.l.b16 %v366
    %v435 = vunpack.c.l.b16 %v367
    %v436 = vunpack.c.l.b16 %v368
    %v437 = vunpack.c.l.b16 %v369
    %v438 = vunpack.c.l.b16 %v370
    %v439 = vunpack.c.l.b16 %v371
    %v440 = vunpack.c.l.b16 %v372
    %v441 = vunpack.c.l.b16 %v373
    %v442 = vunpack.c.l.b16 %v374
    %v443 = vunpack.c.l.b16 %v375
    %v444 = vpack.c.b16 %v413, %v412
    %v445 = vpack.c.b16 %v415, %v414
    %v446 = vpack.c.b16 %v417, %v416
    %v447 = vpack.c.b16 %v419, %v418
    %v448 = vpack.c.b16 %v421, %v420
    %v449 = vpack.c.b16 %v423, %v422
    %v450 = vpack.c.b16 %v425, %v424
    %v451 = vpack.c.b16 %v427, %v426
    %v452 = vpack.c.b16 %v429, %v428
    %v453 = vpack.c.b16 %v431, %v430
    %v454 = vpack.c.b16 %v433, %v432
    %v455 = vpack.c.b16 %v435, %v434
    %v456 = vpack.c.b16 %v437, %v436
    %v457 = vpack.c.b16 %v439, %v438
    %v458 = vpack.c.b16 %v441, %v440
    %v459 = vpack.c.b16 %v443, %v442
    %476 = vmatpush.bf16.msra.mxu0 %v451
    %477 = vmatpush.bf16.msra.mxu0 %v450
    %478 = vmatpush.bf16.msra.mxu0 %v449
    %479 = vmatpush.bf16.msra.mxu0 %v448
    %480 = vmatpush.bf16.msra.mxu0 %v447
    %481 = vmatpush.bf16.msra.mxu0 %v446
    %482 = vmatpush.bf16.msra.mxu0 %v445
    %483 = vmatpush.bf16.msra.mxu0 %v444
    %484 = vmatmul.bf16.gmra.mxu0 %v342
    %v485 = vpop.f32.mrf.mxu0
    %v486 = vadd.f32 %v378, %v485
    %v487 = vpop.f32.mrf.mxu0
    %v488 = vadd.f32 %v378, %v487
    %489 = vdwg.mxu0
    %490 = vmatpush.bf16.msra.mxu0 %v459
    %491 = vmatpush.bf16.msra.mxu0 %v458
    %492 = vmatpush.bf16.msra.mxu0 %v457
    %493 = vmatpush.bf16.msra.mxu0 %v456
    %494 = vmatpush.bf16.msra.mxu0 %v455
    %495 = vmatpush.bf16.msra.mxu0 %v454
    %496 = vmatpush.bf16.msra.mxu0 %v453
    %497 = vmatpush.bf16.msra.mxu0 %v452
    %498 = vmatmul.bf16.gmra.mxu0 %v343
    %v499 = vpop.f32.mrf.mxu0
    %v500 = vadd.f32 %v486, %v499
    %v501 = vpop.f32.mrf.mxu0
    %v502 = vadd.f32 %v488, %v501
    %503 = vdwg.mxu0
    %v504 = vmul.f32 %v500, 0.01
    %v505 = vmul.f32 %v502, 0.01
    %v506 = vmax.f32 %v500, %v504
    %v507 = vmax.f32 %v502, %v505
    %v508 = vpack.c.bf16 %v507, %v506
    %v509 = vld [vmem:[#allocation10] sm:$0xf]
    %v510 = vld [vmem:[#allocation10 + $0x4] sm:$0xf]
    %v511 = vld [vmem:[#allocation10 + $0x8] sm:$0xf]
    %v512 = vld [vmem:[#allocation10 + $0xc] sm:$0xf]
    %v513 = vld [vmem:[#allocation10 + $0x10] sm:$0xf]
    %v514 = vld [vmem:[#allocation10 + $0x14] sm:$0xf]
    %v515 = vld [vmem:[#allocation10 + $0x18] sm:$0xf]
    %v516 = vld [vmem:[#allocation10 + $0x1c] sm:$0xf]
    %v517 = vld [vmem:[#allocation10 + $0x20] sm:$0xf]
    %v518 = vld [vmem:[#allocation10 + $0x24] sm:$0xf]
    %v519 = vld [vmem:[#allocation10 + $0x28] sm:$0xf]
    %v520 = vld [vmem:[#allocation10 + $0x2c] sm:$0xf]
    %v521 = vld [vmem:[#allocation10 + $0x30] sm:$0xf]
    %v522 = vld [vmem:[#allocation10 + $0x34] sm:$0xf]
    %v523 = vld [vmem:[#allocation10 + $0x38] sm:$0xf]
    %v524 = vld [vmem:[#allocation10 + $0x3c] sm:$0xf]
    %v525 = vld [vmem:[%s8] sm:$0x1]
    %v527 = vperm.slane %v525, 0
    %v545 = vunpack.c.l.b16 %v509
    %v546 = vunpack.c.l.b16 %v510
    %v547 = vunpack.c.l.b16 %v511
    %v548 = vunpack.c.l.b16 %v512
    %v549 = vunpack.c.l.b16 %v513
    %v550 = vunpack.c.l.b16 %v514
    %v551 = vunpack.c.l.b16 %v515
    %v552 = vunpack.c.l.b16 %v516
    %v553 = vunpack.c.l.b16 %v517
    %v554 = vunpack.c.l.b16 %v518
    %v555 = vunpack.c.l.b16 %v519
    %v556 = vunpack.c.l.b16 %v520
    %v557 = vunpack.c.l.b16 %v521
    %v558 = vunpack.c.l.b16 %v522
    %v559 = vunpack.c.l.b16 %v523
    %v560 = vunpack.c.l.b16 %v524
    %v561 = vpack.c.b16 %v546, %v545
    %v562 = vpack.c.b16 %v548, %v547
    %v563 = vpack.c.b16 %v550, %v549
    %v564 = vpack.c.b16 %v552, %v551
    %v565 = vpack.c.b16 %v554, %v553
    %v566 = vpack.c.b16 %v556, %v555
    %v567 = vpack.c.b16 %v558, %v557
    %v568 = vpack.c.b16 %v560, %v559
    %577 = vmatpush.bf16.msra.mxu0 %v568
    %578 = vmatpush.bf16.msra.mxu0 %v567
    %579 = vmatpush.bf16.msra.mxu0 %v566
    %580 = vmatpush.bf16.msra.mxu0 %v565
    %581 = vmatpush.bf16.msra.mxu0 %v564
    %582 = vmatpush.bf16.msra.mxu0 %v563
    %583 = vmatpush.bf16.msra.mxu0 %v562
    %584 = vmatpush.bf16.msra.mxu0 %v561
    %585 = vmatmul.bf16.gmra.mxu0 %v508
    %v586 = vpop.f32.mrf.mxu0
    %v587 = vadd.f32 %v527, %v586
    %v588 = vpop.f32.mrf.mxu0
    %v589 = vadd.f32 %v527, %v588
    %590 = vdwg.mxu0
    %591 = vmax.xlane.f32.xlu0 %v587
    %v592 = vpop.xlane.xlu0 %591
    %593 = vmax.xlane.f32.xlu0 %v589
    %v594 = vpop.xlane.xlu0 %593
    %v595 = vsub.f32 %v587, %v592
    %v596 = vsub.f32 %v589, %v594
    %v597 = vmul.f32 %v595, 1.442695
    %v598 = vpow.pop %v597
    %v599 = vmul.f32 %v596, 1.442695
    %v600 = vpow.pop %v599
    %601 = vadd.xlane.f32.xlu0 %v598
    %v602 = vpop.xlane.xlu0 %601
    %603 = vadd.xlane.f32.xlu0 %v600
    %v604 = vpop.xlane.xlu0 %603
    %v605 = vrcp.pop %v602
    %v606 = vrcp.pop %v604
    %v607 = vmul.f32 %v598, %v605
    %v608 = vmul.f32 %v600, %v606
    %609 = vst [vmem:[#allocation11] sm:$0xff] %v607
    %610 = vst [vmem:[#allocation11 + $0x8] sm:$0xff] %v608
    // Predicated region
    $region58: #{tpu_custom_call.1} parent=1 // pred_check
      _
    $region59: #{tpu_custom_call.1} parent=1 // pred_check_branch
      %612 = sbr.rel (0) target = $region61
    $region60: #{tpu_custom_call.1} parent=1 // pred_region
      %614 = vsyncadd [#allocation4], 0
      %s615 = sshll.u32 [#allocation11], 4
      %s616 = int_to_ptr.vmem [resolvable:$true] %s615
      %s617 = sshll.u32 %s9, 4
      %s618 = int_to_ptr.hbm [resolvable:$true] %s617
      %623 = dma.vmem_to_hbm [thread:$0]  %s616, 256, %s618, [#allocation4], 128, 128, 8
    $region61: #{tpu_custom_call.1} parent=1 // pred_fallthru
      _
    // Predicated region
    $region62: #{tpu_custom_call.1} parent=1 // pred_check
      _
    $region63: #{tpu_custom_call.1} parent=1 // pred_check_branch
      %625 = sbr.rel (0) target = $region65
    $region64: #{tpu_custom_call.1} parent=1 // pred_region
      %627 = dma.done [#allocation4], 256
    $region65: #{tpu_custom_call.1} parent=1 // pred_fallthru
      _
    %628 = vsyncpa [#allocation3], 1
    %629 = vsyncpa [#allocation6], 1
    %630 = vsyncpa [#allocation9], 1
    %631 = vsyncpa [#allocation4], 1

</llo_original>
